<compile_context>
chip_gen: v6e
topology: v6e:2x2x1
jax: 0.10.0
libtpu: 0.0.40
codegen_flags: <defaults>
</compile_context>

<pallas_src>
import functools

import jax
import jax.numpy as jnp
from jax.experimental import pallas as pl
from jax.experimental.pallas import tpu as pltpu


def _round_up(v, m):
    return -(-v // m) * m


def _choose_tiling(B, L, Cp, O, x_itemsize, *, max_lanes=1024,
                   vmem_budget=24 * 1024 * 1024):
    """Pick the per-tile batch fold Bt, number of grid steps and the 128-aligned folded
    lane width P.  Prefers >= 2 grid steps (v7x has 2 TensorCores) when that keeps the
    tiles lane-dense, and keeps the estimated per-step footprint under vmem_budget."""
    def footprint(p):
        return (2 * Cp * p * x_itemsize      # double-buffered streamed x tile
                + 2 * O * p * x_itemsize     # double-buffered output slab
                + 4 * Cp * p * 4             # rolled/masked copies (+ slab headroom)
                + 4 * O * p * 4)             # y, y*y, a_full, c_full intermediates

    while max_lanes > 128 and footprint(max_lanes) > vmem_budget:
        max_lanes //= 2

    cands = [bt for bt in range(1, B + 1)
             if B % bt == 0 and bt * L <= max_lanes and (bt * L) % 128 == 0]
    split = [bt for bt in cands if B // bt >= 2]
    if split:
        bt = max(split)        # lane-dense AND >= 2 parallel grid steps
    elif cands:
        bt = max(cands)        # lane-dense, single step
    else:
        # Awkward/tiny B*L: take the largest divisor that fits and pad lanes up to 128.
        fit = [d for d in range(1, B + 1) if B % d == 0 and d * L <= max_lanes]
        bt = max(fit) if fit else 1
    P = _round_up(bt * L, 128)
    return bt, B // bt, P


def block_kernel(x_ref, w_ref, b_ref, gg_ref, gb_ref, seg_ref, segT_ref,
                 mprev_ref, mnext_ref, agrp_ref, o_ref, *,
                 eps_gn, matmul_dtype, fuse_taps):
    # x_ref:    (1, Cp, P)   streamed lane-folded input tile (original model dtype)
    # w_ref:    (O, 3*Cp) if fuse_taps else (3, O, Cp)   pre-standardized conv weight
    # b_ref:    (O, 1)       conv bias (f32, resident)
    # gg_ref:   (1, O, Bt)   effective scale  = gamma * (film_scale + 1)
    # gb_ref:   (1, O, Bt)   effective shift  = beta*(film_scale+1)+film_shift
    # seg_ref:  (P, Bt)      per-sample segment one-hot (lane reduction)
    # segT_ref: (Bt, P)      its transpose (per-sample broadcast back to lanes)
    # mprev_ref/mnext_ref: (1, P) edge masks zeroing the wrapped conv taps
    # agrp_ref: (O, O)       block-diagonal group-average matrix (carries 1/(cg*L))
    # o_ref:    (O, P)       lane-dense output slab
    P = o_ref.shape[1]
    cdt = matmul_dtype

    xq = x_ref[0].astype(cdt)                                           # (Cp, P)
    # Conv halo via lane rotation + precomputed edge masks (tile edges coincide with
    # sample boundaries, so the wrapped-around values are always masked off).
    x_prev = pltpu.roll(xq, shift=1, axis=1) * mprev_ref[...].astype(cdt)
    x_next = pltpu.roll(xq, shift=P - 1, axis=1) * mnext_ref[...].astype(cdt)

    if fuse_taps:
        # Tiny Cp: one MXU matmul with contraction 3*Cp.
        slab = jnp.concatenate([x_prev, xq, x_next], axis=0)           # (3*Cp, P)
        y = jnp.dot(w_ref[...], slab, preferred_element_type=jnp.float32)
    else:
        # Larger Cp: 3 accumulated matmuls against free leading-axis weight views
        # (no (3*Cp, P) slab materialization in VMEM).
        y = jnp.dot(w_ref[0], x_prev, preferred_element_type=jnp.float32)
        y = y + jnp.dot(w_ref[1], xq, preferred_element_type=jnp.float32)
        y = y + jnp.dot(w_ref[2], x_next, preferred_element_type=jnp.float32)
    y = y + b_ref[...]                                                  # (O, P) f32

    # ---- GroupNorm statistics: lane reductions + group combine, all in f32 ----
    seg = seg_ref[...]
    s1 = jnp.dot(y, seg, preferred_element_type=jnp.float32)           # (O, Bt)
    s2 = jnp.dot(y * y, seg, preferred_element_type=jnp.float32)       # (O, Bt)
    mean_ob = jnp.dot(agrp_ref[...], s1, preferred_element_type=jnp.float32)
    ex2_ob = jnp.dot(agrp_ref[...], s2, preferred_element_type=jnp.float32)
    # TODO(synk): E[y^2]-E[y]^2 can cancel when |mean| >> std at production scale;
    # switch to a centered second pass if tolerances tighten.
    var_ob = jnp.maximum(ex2_ob - mean_ob * mean_ob, 0.0)
    rstd_ob = jax.lax.rsqrt(var_ob + eps_gn)

    # ---- folded GN affine (+ FiLM), broadcast per-sample columns back to lanes ----
    a_ob = rstd_ob * gg_ref[0]                                          # (O, Bt)
    c_ob = gb_ref[0] - mean_ob * a_ob
    a_full = jnp.dot(a_ob, segT_ref[...], preferred_element_type=jnp.float32)
    c_full = jnp.dot(c_ob, segT_ref[...], preferred_element_type=jnp.float32)
    z = y * a_full + c_full        # single FMA: normalize + affine (+ FiLM)

    # ---- SiLU ----
    o_ref[...] = (z * jax.nn.sigmoid(z)).astype(o_ref.dtype)


def block_forward(x, w, b, gn_w, gn_b, scale_shift=None, *, groups=8,
                  matmul_dtype=jnp.bfloat16, fuse_taps=None):
    """x: (B, C, L); w: (O, C, 3); b/gn_w/gn_b: (O,);
    scale_shift: optional ((B,O,1),(B,O,1)) FiLM conditioning.
    matmul_dtype defaults to bf16 (v6e/v7x MXU-native); pass jnp.float32 for exact parity."""
    B, C, L = x.shape
    O, _, K = w.shape
    assert K == 3 and O % groups == 0
    f32 = jnp.float32
    cg = O // groups

    # --- hoisted (batch-invariant) weight standardization ---
    eps_ws = 1e-5 if x.dtype == jnp.float32 else 1e-3
    w32 = w.astype(f32)
    w_mean = jnp.mean(w32, axis=(1, 2), keepdims=True)
    w_var = jnp.mean(jnp.square(w32 - w_mean), axis=(1, 2), keepdims=True)
    w_norm = (w32 - w_mean) * jax.lax.rsqrt(w_var + eps_ws)             # (O, C, 3)

    Cp = _round_up(C, 8)
    if fuse_taps is None:
        fuse_taps = Cp < 128
    wk = jnp.pad(jnp.transpose(w_norm, (2, 0, 1)),
                 ((0, 0), (0, 0), (0, Cp - C)))                          # (3, O, Cp)
    if fuse_taps:
        w_in = jnp.transpose(wk, (1, 0, 2)).reshape(O, 3 * Cp).astype(matmul_dtype)
        w_spec = pl.BlockSpec((O, 3 * Cp), lambda i: (0, 0))
    else:
        w_in = wk.astype(matmul_dtype)
        w_spec = pl.BlockSpec((3, O, Cp), lambda i: (0, 0, 0))

    # --- fold GroupNorm affine with the optional FiLM scale/shift -> per (O, B) ---
    if scale_shift is None:
        eff_g = jnp.broadcast_to(gn_w.astype(f32)[:, None], (O, B))
        eff_b = jnp.broadcast_to(gn_b.astype(f32)[:, None], (O, B))
    else:
        scale, shift = scale_shift
        scale = jnp.transpose(scale.reshape(B, O)).astype(f32)           # (O, B)
        shift = jnp.transpose(shift.reshape(B, O)).astype(f32)
        eff_g = gn_w.astype(f32)[:, None] * (scale + 1.0)
        eff_b = gn_b.astype(f32)[:, None] * (scale + 1.0) + shift

    # --- tiling: fold batch onto a 128-aligned lane axis ---
    Bt, n_tiles, P = _choose_tiling(B, L, Cp, O, jnp.dtype(x.dtype).itemsize)
    V = Bt * L

    xt = jnp.transpose(x, (1, 0, 2)).reshape(C, n_tiles, V)
    xt = jnp.transpose(xt, (1, 0, 2))                                    # (n_tiles, C, V)
    xt = jnp.pad(xt, ((0, 0), (0, Cp - C), (0, P - V)))                  # stays in x.dtype

    gg = jnp.transpose(eff_g.reshape(O, n_tiles, Bt), (1, 0, 2))         # (n_tiles, O, Bt)
    gb = jnp.transpose(eff_b.reshape(O, n_tiles, Bt), (1, 0, 2))

    # --- constant index structures, hoisted out of the per-step kernel body ---
    p_idx = jnp.arange(P)
    b_idx = jnp.arange(Bt)
    segT = ((p_idx[None, :] >= b_idx[:, None] * L)
            & (p_idx[None, :] < (b_idx[:, None] + 1) * L)).astype(f32)   # (Bt, P)
    seg = segT.T                                                         # (P, Bt)
    valid = p_idx < V
    mprev = jnp.where(valid & (p_idx % L == 0), 0.0, 1.0).reshape(1, P).astype(f32)
    mnext = jnp.where(valid & (p_idx % L == L - 1), 0.0, 1.0).reshape(1, P).astype(f32)
    og = jnp.arange(O) // cg
    agrp = (og[:, None] == og[None, :]).astype(f32) / float(cg * L)      # (O, O)

    kernel = functools.partial(block_kernel, eps_gn=1e-5,
                               matmul_dtype=matmul_dtype, fuse_taps=fuse_taps)

    out = pl.pallas_call(
        kernel,
        out_shape=jax.ShapeDtypeStruct((O, n_tiles * P), x.dtype),
        grid=(n_tiles,),
        in_specs=[
            pl.BlockSpec((1, Cp, P), lambda i: (i, 0, 0)),     # streamed x tile
            w_spec,                                            # resident conv weight
            pl.BlockSpec((O, 1), lambda i: (0, 0)),            # resident conv bias
            pl.BlockSpec((1, O, Bt), lambda i: (i, 0, 0)),     # eff gamma (per tile)
            pl.BlockSpec((1, O, Bt), lambda i: (i, 0, 0)),     # eff beta  (per tile)
            pl.BlockSpec((P, Bt), lambda i: (0, 0)),           # segment one-hot
            pl.BlockSpec((Bt, P), lambda i: (0, 0)),           # segment one-hot (T)
            pl.BlockSpec((1, P), lambda i: (0, 0)),            # prev-tap edge mask
            pl.BlockSpec((1, P), lambda i: (0, 0)),            # next-tap edge mask
            pl.BlockSpec((O, O), lambda i: (0, 0)),            # group-average matrix
        ],
        out_specs=pl.BlockSpec((O, P), lambda i: (0, i)),      # lane-dense output slab
        compiler_params=pltpu.CompilerParams(
            dimension_semantics=("parallel",),
            vmem_limit_bytes=32 * 1024 * 1024),
    )(xt, w_in, b.astype(f32).reshape(O, 1), gg, gb, seg, segT, mprev, mnext, agrp)

    # unfold (O, n_tiles*P) -> (B, O, L), dropping the lane padding
    out = out.reshape(O, n_tiles, P)[:, :, :V].reshape(O, n_tiles, Bt, L)
    return jnp.transpose(out, (1, 2, 0, 3)).reshape(B, O, L).astype(x.dtype)


def block_reference(x, w, b, gn_w, gn_b, scale_shift=None, *, groups=8):
    """Pure-JAX reference matching the PyTorch forward."""
    eps_ws = 1e-5 if x.dtype == jnp.float32 else 1e-3
    w_mean = jnp.mean(w, axis=(1, 2), keepdims=True)
    w_var = jnp.mean(jnp.square(w - w_mean), axis=(1, 2), keepdims=True)
    w_norm = (w - w_mean) * jax.lax.rsqrt(w_var + eps_ws)
    y = jax.lax.conv_general_dilated(
        x, w_norm, window_strides=(1,), padding=((1, 1),),
        dimension_numbers=("NCH", "OIH", "NCH"))
    y = y + b[None, :, None]
    B, O, L = y.shape
    yg = y.reshape(B, groups, O // groups, L)
    mu = jnp.mean(yg, axis=(2, 3), keepdims=True)
    var = jnp.mean(jnp.square(yg - mu), axis=(2, 3), keepdims=True)
    yg = (yg - mu) * jax.lax.rsqrt(var + 1e-5)
    y = yg.reshape(B, O, L) * gn_w[None, :, None] + gn_b[None, :, None]
    if scale_shift is not None:
        scale, shift = scale_shift
        y = y * (scale + 1.0) + shift
    return y * jax.nn.sigmoid(y)


if __name__ == "__main__":
    key = jax.random.PRNGKey(0)
    k1, k2, k3, k4, k5, k6, k7 = jax.random.split(key, 7)

    B, C_in, C_out, L, groups = 2, 4, 16, 16, 8

    x = jax.random.normal(k1, (B, C_in, L), dtype=jnp.float32)
    w = jax.random.normal(k2, (C_out, C_in, 3), dtype=jnp.float32) * 0.2
    b = jax.random.normal(k3, (C_out,), dtype=jnp.float32) * 0.1
    gn_w = 1.0 + 0.1 * jax.random.normal(k4, (C_out,), dtype=jnp.float32)
    gn_b = 0.1 * jax.random.normal(k5, (C_out,), dtype=jnp.float32)
    film_scale = 0.2 * jax.random.normal(k6, (B, C_out, 1), dtype=jnp.float32)
    film_shift = 0.2 * jax.random.normal(k7, (B, C_out, 1), dtype=jnp.float32)

    ref_nofilm = block_reference(x, w, b, gn_w, gn_b, None, groups=groups)
    ref_film = block_reference(x, w, b, gn_w, gn_b, (film_scale, film_shift), groups=groups)

    # 1) f32 matmul, fused-tap path (auto-selected for tiny channel counts)
    out = jax.block_until_ready(block_forward(
        x, w, b, gn_w, gn_b, None, groups=groups,
        matmul_dtype=jnp.float32, fuse_taps=True))
    assert out.shape == (B, C_out, L)
    err = float(jnp.max(jnp.abs(out - ref_nofilm)))
    assert jnp.allclose(out, ref_nofilm, atol=1e-4, rtol=1e-4), f"mismatch fused/f32: {err}"

    # 2) f32 matmul, split-tap path (used when Cp >= 128 in production)
    out = jax.block_until_ready(block_forward(
        x, w, b, gn_w, gn_b, None, groups=groups,
        matmul_dtype=jnp.float32, fuse_taps=False))
    err = float(jnp.max(jnp.abs(out - ref_nofilm)))
    assert jnp.allclose(out, ref_nofilm, atol=1e-4, rtol=1e-4), f"mismatch split/f32: {err}"

    # 3) f32 matmul with FiLM scale/shift (time-embedding conditioning)
    out = jax.block_until_ready(block_forward(
        x, w, b, gn_w, gn_b, (film_scale, film_shift), groups=groups,
        matmul_dtype=jnp.float32))
    err = float(jnp.max(jnp.abs(out - ref_film)))
    assert jnp.allclose(out, ref_film, atol=1e-4, rtol=1e-4), f"mismatch film/f32: {err}"

    # 4) default bf16 conv matmul (v6e/v7x MXU-native), looser tolerance
    out = jax.block_until_ready(block_forward(
        x, w, b, gn_w, gn_b, (film_scale, film_shift), groups=groups))
    err = float(jnp.max(jnp.abs(out - ref_film)))
    assert jnp.allclose(out, ref_film, atol=5e-2, rtol=5e-2), f"mismatch film/bf16: {err}"

    # TODO(synk): the full ElucidatedDiffusion forward (sigma sampling, c_in/c_skip/c_out
    # preconditioning, weighted MSE loss) wraps an external U-Net `net` and is
    # orchestration around it, not a single kernel.
    print("KERNEL_OK")
</pallas_src>

<mosaic_0001>
module attributes {stable_mosaic.version = 11 : i64} {
  func.func @block_kernel(%arg0: i32, %arg1: memref<1x8x128xf32, #tpu.memory_space<vmem>>, %arg2: memref<16x24xf32, #tpu.memory_space<vmem>>, %arg3: memref<16x1xf32, #tpu.memory_space<vmem>>, %arg4: memref<1x16x2xf32, #tpu.memory_space<vmem>>, %arg5: memref<1x16x2xf32, #tpu.memory_space<vmem>>, %arg6: memref<128x2xf32, #tpu.memory_space<vmem>>, %arg7: memref<2x128xf32, #tpu.memory_space<vmem>>, %arg8: memref<1x128xf32, #tpu.memory_space<vmem>>, %arg9: memref<1x128xf32, #tpu.memory_space<vmem>>, %arg10: memref<16x16xf32, #tpu.memory_space<vmem>>, %arg11: memref<16x128xf32, #tpu.memory_space<vmem>>) attributes {dimension_semantics = [#tpu.dimension_semantics<parallel>], iteration_bounds = array<i64: 1>, scalar_prefetch = 0 : i64, scratch_operands = 0 : i64, tpu.core_type = #tpu.core_type<tc>, window_params = [{transform_indices = @transform_0, window_bounds = array<i64: 1, 8, 128>}, {pipeline_mode = #tpu.pipeline_mode<synchronous>, transform_indices = @transform_1, window_bounds = array<i64: 16, 24>}, {pipeline_mode = #tpu.pipeline_mode<synchronous>, transform_indices = @transform_2, window_bounds = array<i64: 16, 1>}, {transform_indices = @transform_3, window_bounds = array<i64: 1, 16, 2>}, {transform_indices = @transform_4, window_bounds = array<i64: 1, 16, 2>}, {pipeline_mode = #tpu.pipeline_mode<synchronous>, transform_indices = @transform_5, window_bounds = array<i64: 128, 2>}, {pipeline_mode = #tpu.pipeline_mode<synchronous>, transform_indices = @transform_6, window_bounds = array<i64: 2, 128>}, {pipeline_mode = #tpu.pipeline_mode<synchronous>, transform_indices = @transform_7, window_bounds = array<i64: 1, 128>}, {pipeline_mode = #tpu.pipeline_mode<synchronous>, transform_indices = @transform_8, window_bounds = array<i64: 1, 128>}, {pipeline_mode = #tpu.pipeline_mode<synchronous>, transform_indices = @transform_9, window_bounds = array<i64: 16, 16>}, {transform_indices = @transform_10, window_bounds = array<i64: 16, 128>}]} {
    %c0 = arith.constant 0 : index
    %c0_0 = arith.constant 0 : index
    %c0_1 = arith.constant 0 : index
    %0 = vector.load %arg1[%c0, %c0_0, %c0_1] : memref<1x8x128xf32, #tpu.memory_space<vmem>>, vector<1x8x128xf32>
    %1 = vector.shape_cast %0 : vector<1x8x128xf32> to vector<8x128xf32>
    %c1_i32 = arith.constant 1 : i32
    %2 = tpu.dynamic_rotate %1 by %c1_i32 dim 1 : vector<8x128xf32>, i32 -> vector<8x128xf32>
    %c0_2 = arith.constant 0 : index
    %c0_3 = arith.constant 0 : index
    %3 = vector.load %arg8[%c0_2, %c0_3] : memref<1x128xf32, #tpu.memory_space<vmem>>, vector<1x128xf32>
    %4 = vector.broadcast %3 : vector<1x128xf32> to vector<8x128xf32>
    %5 = arith.mulf %2, %4 : vector<8x128xf32>
    %c127_i32 = arith.constant 127 : i32
    %6 = tpu.dynamic_rotate %1 by %c127_i32 dim 1 : vector<8x128xf32>, i32 -> vector<8x128xf32>
    %c0_4 = arith.constant 0 : index
    %c0_5 = arith.constant 0 : index
    %7 = vector.load %arg9[%c0_4, %c0_5] : memref<1x128xf32, #tpu.memory_space<vmem>>, vector<1x128xf32>
    %8 = vector.broadcast %7 : vector<1x128xf32> to vector<8x128xf32>
    %9 = arith.mulf %6, %8 : vector<8x128xf32>
    %10 = tpu.concatenate %5, %1, %9 in 0 : vector<8x128xf32>, vector<8x128xf32>, vector<8x128xf32> -> vector<24x128xf32>
    %c0_6 = arith.constant 0 : index
    %c0_7 = arith.constant 0 : index
    %11 = vector.load %arg2[%c0_6, %c0_7] : memref<16x24xf32, #tpu.memory_space<vmem>>, vector<16x24xf32>
    %cst = arith.constant dense<0.000000e+00> : vector<16x128xf32>
    %12 = tpu.matmul %11, %10, %cst {dimension_numbers = #tpu.dot_dimension_numbers<[1], [0], [0], [1], [0, 0, 1, 1], [], []>} : vector<16x24xf32>, vector<24x128xf32>, vector<16x128xf32> -> vector<16x128xf32>
    %c0_8 = arith.constant 0 : index
    %c0_9 = arith.constant 0 : index
    %13 = vector.load %arg3[%c0_8, %c0_9] : memref<16x1xf32, #tpu.memory_space<vmem>>, vector<16x1xf32>
    %14 = vector.broadcast %13 : vector<16x1xf32> to vector<16x128xf32>
    %15 = arith.addf %12, %14 : vector<16x128xf32>
    %c0_10 = arith.constant 0 : index
    %c0_11 = arith.constant 0 : index
    %16 = vector.load %arg6[%c0_10, %c0_11] : memref<128x2xf32, #tpu.memory_space<vmem>>, vector<128x2xf32>
    %cst_12 = arith.constant dense<0.000000e+00> : vector<16x2xf32>
    %17 = tpu.matmul %15, %16, %cst_12 {dimension_numbers = #tpu.dot_dimension_numbers<[1], [0], [0], [1], [0, 0, 1, 1], [], []>} : vector<16x128xf32>, vector<128x2xf32>, vector<16x2xf32> -> vector<16x2xf32>
    %18 = arith.mulf %15, %15 : vector<16x128xf32>
    %cst_13 = arith.constant dense<0.000000e+00> : vector<16x2xf32>
    %19 = tpu.matmul %18, %16, %cst_13 {dimension_numbers = #tpu.dot_dimension_numbers<[1], [0], [0], [1], [0, 0, 1, 1], [], []>} : vector<16x128xf32>, vector<128x2xf32>, vector<16x2xf32> -> vector<16x2xf32>
    %c0_14 = arith.constant 0 : index
    %c0_15 = arith.constant 0 : index
    %20 = vector.load %arg10[%c0_14, %c0_15] : memref<16x16xf32, #tpu.memory_space<vmem>>, vector<16x16xf32>
    %cst_16 = arith.constant dense<0.000000e+00> : vector<16x2xf32>
    %21 = tpu.matmul %20, %17, %cst_16 {dimension_numbers = #tpu.dot_dimension_numbers<[1], [0], [0], [1], [0, 0, 1, 1], [], []>} : vector<16x16xf32>, vector<16x2xf32>, vector<16x2xf32> -> vector<16x2xf32>
    %c0_17 = arith.constant 0 : index
    %c0_18 = arith.constant 0 : index
    %22 = vector.load %arg10[%c0_17, %c0_18] : memref<16x16xf32, #tpu.memory_space<vmem>>, vector<16x16xf32>
    %cst_19 = arith.constant dense<0.000000e+00> : vector<16x2xf32>
    %23 = tpu.matmul %22, %19, %cst_19 {dimension_numbers = #tpu.dot_dimension_numbers<[1], [0], [0], [1], [0, 0, 1, 1], [], []>} : vector<16x16xf32>, vector<16x2xf32>, vector<16x2xf32> -> vector<16x2xf32>
    %24 = arith.mulf %21, %21 : vector<16x2xf32>
    %25 = arith.subf %23, %24 : vector<16x2xf32>
    %cst_20 = arith.constant 0.000000e+00 : f32
    %26 = vector.broadcast %cst_20 : f32 to vector<16x2xf32>
    %27 = arith.maximumf %25, %26 : vector<16x2xf32>
    %cst_21 = arith.constant 9.99999974E-6 : f32
    %28 = vector.broadcast %cst_21 : f32 to vector<16x2xf32>
    %29 = arith.addf %27, %28 : vector<16x2xf32>
    %30 = math.rsqrt %29 : vector<16x2xf32>
    %c0_22 = arith.constant 0 : index
    %c0_23 = arith.constant 0 : index
    %c0_24 = arith.constant 0 : index
    %31 = vector.load %arg4[%c0_22, %c0_23, %c0_24] : memref<1x16x2xf32, #tpu.memory_space<vmem>>, vector<1x16x2xf32>
    %32 = vector.shape_cast %31 : vector<1x16x2xf32> to vector<16x2xf32>
    %33 = arith.mulf %30, %32 : vector<16x2xf32>
    %c0_25 = arith.constant 0 : index
    %c0_26 = arith.constant 0 : index
    %c0_27 = arith.constant 0 : index
    %34 = vector.load %arg5[%c0_25, %c0_26, %c0_27] : memref<1x16x2xf32, #tpu.memory_space<vmem>>, vector<1x16x2xf32>
    %35 = vector.shape_cast %34 : vector<1x16x2xf32> to vector<16x2xf32>
    %36 = arith.mulf %21, %33 : vector<16x2xf32>
    %37 = arith.subf %35, %36 : vector<16x2xf32>
    %c0_28 = arith.constant 0 : index
    %c0_29 = arith.constant 0 : index
    %38 = vector.load %arg7[%c0_28, %c0_29] : memref<2x128xf32, #tpu.memory_space<vmem>>, vector<2x128xf32>
    %cst_30 = arith.constant dense<0.000000e+00> : vector<16x128xf32>
    %39 = tpu.matmul %33, %38, %cst_30 {dimension_numbers = #tpu.dot_dimension_numbers<[1], [0], [0], [1], [0, 0, 1, 1], [], []>} : vector<16x2xf32>, vector<2x128xf32>, vector<16x128xf32> -> vector<16x128xf32>
    %c0_31 = arith.constant 0 : index
    %c0_32 = arith.constant 0 : index
    %40 = vector.load %arg7[%c0_31, %c0_32] : memref<2x128xf32, #tpu.memory_space<vmem>>, vector<2x128xf32>
    %cst_33 = arith.constant dense<0.000000e+00> : vector<16x128xf32>
    %41 = tpu.matmul %37, %40, %cst_33 {dimension_numbers = #tpu.dot_dimension_numbers<[1], [0], [0], [1], [0, 0, 1, 1], [], []>} : vector<16x2xf32>, vector<2x128xf32>, vector<16x128xf32> -> vector<16x128xf32>
    %42 = arith.mulf %15, %39 : vector<16x128xf32>
    %43 = arith.addf %42, %41 : vector<16x128xf32>
    %44 = arith.negf %43 : vector<16x128xf32>
    %45 = math.exp %44 : vector<16x128xf32>
    %cst_34 = arith.constant 1.000000e+00 : f32
    %46 = vector.broadcast %cst_34 : f32 to vector<16x128xf32>
    %47 = arith.addf %46, %45 : vector<16x128xf32>
    %48 = arith.divf %46, %47 : vector<16x128xf32>
    %49 = arith.mulf %43, %48 : vector<16x128xf32>
    %c0_35 = arith.constant 0 : index
    %c0_36 = arith.constant 0 : index
    %50 = vector.load %arg11[%c0_35, %c0_36] : memref<16x128xf32, #tpu.memory_space<vmem>>, vector<16x128xf32>
    tpu.vector_store %arg11[%c0_35, %c0_36], %49 {strides = array<i32>} : memref<16x128xf32, #tpu.memory_space<vmem>>, vector<16x128xf32>,
    return
  }
  func.func @transform_0(%arg0: i32) -> (i32, i32, i32) {
    %c0_i32 = arith.constant 0 : i32
    %c0_i32_0 = arith.constant 0 : i32
    %c0_i32_1 = arith.constant 0 : i32
    return %arg0, %c0_i32, %c0_i32_0 : i32, i32, i32
  }
  func.func @transform_1(%arg0: i32) -> (i32, i32) {
    %c0_i32 = arith.constant 0 : i32
    %c0_i32_0 = arith.constant 0 : i32
    %c0_i32_1 = arith.constant 0 : i32
    return %c0_i32, %c0_i32_0 : i32, i32
  }
  func.func @transform_2(%arg0: i32) -> (i32, i32) {
    %c0_i32 = arith.constant 0 : i32
    %c0_i32_0 = arith.constant 0 : i32
    %c0_i32_1 = arith.constant 0 : i32
    return %c0_i32, %c0_i32_0 : i32, i32
  }
  func.func @transform_3(%arg0: i32) -> (i32, i32, i32) {
    %c0_i32 = arith.constant 0 : i32
    %c0_i32_0 = arith.constant 0 : i32
    %c0_i32_1 = arith.constant 0 : i32
    return %arg0, %c0_i32, %c0_i32_0 : i32, i32, i32
  }
  func.func @transform_4(%arg0: i32) -> (i32, i32, i32) {
    %c0_i32 = arith.constant 0 : i32
    %c0_i32_0 = arith.constant 0 : i32
    %c0_i32_1 = arith.constant 0 : i32
    return %arg0, %c0_i32, %c0_i32_0 : i32, i32, i32
  }
  func.func @transform_5(%arg0: i32) -> (i32, i32) {
    %c0_i32 = arith.constant 0 : i32
    %c0_i32_0 = arith.constant 0 : i32
    %c0_i32_1 = arith.constant 0 : i32
    return %c0_i32, %c0_i32_0 : i32, i32
  }
  func.func @transform_6(%arg0: i32) -> (i32, i32) {
    %c0_i32 = arith.constant 0 : i32
    %c0_i32_0 = arith.constant 0 : i32
    %c0_i32_1 = arith.constant 0 : i32
    return %c0_i32, %c0_i32_0 : i32, i32
  }
  func.func @transform_7(%arg0: i32) -> (i32, i32) {
    %c0_i32 = arith.constant 0 : i32
    %c0_i32_0 = arith.constant 0 : i32
    %c0_i32_1 = arith.constant 0 : i32
    return %c0_i32, %c0_i32_0 : i32, i32
  }
  func.func @transform_8(%arg0: i32) -> (i32, i32) {
    %c0_i32 = arith.constant 0 : i32
    %c0_i32_0 = arith.constant 0 : i32
    %c0_i32_1 = arith.constant 0 : i32
    return %c0_i32, %c0_i32_0 : i32, i32
  }
  func.func @transform_9(%arg0: i32) -> (i32, i32) {
    %c0_i32 = arith.constant 0 : i32
    %c0_i32_0 = arith.constant 0 : i32
    %c0_i32_1 = arith.constant 0 : i32
    return %c0_i32, %c0_i32_0 : i32, i32
  }
  func.func @transform_10(%arg0: i32) -> (i32, i32) {
    %c0_i32 = arith.constant 0 : i32
    %c0_i32_0 = arith.constant 0 : i32
    return %c0_i32, %arg0 : i32, i32
  }
}

</mosaic_0001>

<llo_original>
// kernel: tpu_custom_call.1
$region0: #{tpu_custom_call.1}
  #allocation0 [shape = 'u32[]', space=smem, size = 0x4, offset = 0x4, fixed_abs, tag = 'smem constant byte address 0x4 - core index']
  #allocation1 [shape = 'u32[144,128]{1,0:T(1,128)}', space=vmem, size = 0x12000, scoped, tag = 'internal scratch']
  %s0 = inlined_call_operand.vmem [shape: f32[1,8,128], index: 0, kind: input, shape index: {}]
  %s1 = inlined_call_operand.vmem [shape: f32[16,24], index: 1, kind: input, shape index: {}]
  %s2 = inlined_call_operand.vmem [shape: f32[16,1], index: 2, kind: input, shape index: {}]
  %s3 = inlined_call_operand.vmem [shape: f32[1,16,2], index: 3, kind: input, shape index: {}]
  %s4 = inlined_call_operand.vmem [shape: f32[1,16,2], index: 4, kind: input, shape index: {}]
  %s5 = inlined_call_operand.vmem [shape: f32[128,2], index: 5, kind: input, shape index: {}]
  %s6 = inlined_call_operand.vmem [shape: f32[2,128], index: 6, kind: input, shape index: {}]
  %s7 = inlined_call_operand.vmem [shape: f32[1,128], index: 7, kind: input, shape index: {}]
  %s8 = inlined_call_operand.vmem [shape: f32[1,128], index: 8, kind: input, shape index: {}]
  %s9 = inlined_call_operand.vmem [shape: f32[16,16], index: 9, kind: input, shape index: {}]
  %s10 = inlined_call_operand.hbm [shape: f32[16,128], index: 10, kind: output, shape index: {}]
  %s11 = sld [smem:[#allocation0]]
  $region50: #{tpu_custom_call.1} parent=0
    _
  %s13 = ssub.s32 1, %s11
  %s14 = scalar_select 0, %s13, %s11
  $region1: #{tpu_custom_call.1} parent=0
    #allocation2 [shape = 'u8[8192]{0}', space=vmem, size = 0x2000, scoped, tag = 'output window, operand 0, single buffered']
    #allocation3 [shape = 's32[1]{0}', space=sflag, size = 0x4, scoped, tag = 'scoped memory for tpu_custom_call.1']
    %15 = vsyncpa [#allocation3], 0
    // Predicated region
    $region2: #{tpu_custom_call.1} parent=1 // pred_check
      _
    $region3: #{tpu_custom_call.1} parent=1 // pred_check_branch
      %17 = sbr.rel (0) target = $region5
    $region4: #{tpu_custom_call.1} parent=1 // pred_region
      _
    $region5: #{tpu_custom_call.1} parent=1 // pred_fallthru
      _
    // Predicated region
    $region6: #{tpu_custom_call.1} parent=1 // pred_check
      _
    $region7: #{tpu_custom_call.1} parent=1 // pred_check_branch
      %19 = sbr.rel (0) target = $region9
    $region8: #{tpu_custom_call.1} parent=1 // pred_region
      _
    $region9: #{tpu_custom_call.1} parent=1 // pred_fallthru
      _
    // Predicated region
    $region10: #{tpu_custom_call.1} parent=1 // pred_check
      _
    $region11: #{tpu_custom_call.1} parent=1 // pred_check_branch
      %21 = sbr.rel (0) target = $region13
    $region12: #{tpu_custom_call.1} parent=1 // pred_region
      _
    $region13: #{tpu_custom_call.1} parent=1 // pred_fallthru
      _
    // Predicated region
    $region14: #{tpu_custom_call.1} parent=1 // pred_check
      _
    $region15: #{tpu_custom_call.1} parent=1 // pred_check_branch
      %23 = sbr.rel (0) target = $region17
    $region16: #{tpu_custom_call.1} parent=1 // pred_region
      _
    $region17: #{tpu_custom_call.1} parent=1 // pred_fallthru
      _
    // Predicated region
    $region18: #{tpu_custom_call.1} parent=1 // pred_check
      _
    $region19: #{tpu_custom_call.1} parent=1 // pred_check_branch
      %25 = sbr.rel (0) target = $region21
    $region20: #{tpu_custom_call.1} parent=1 // pred_region
      _
    $region21: #{tpu_custom_call.1} parent=1 // pred_fallthru
      _
    // Predicated region
    $region22: #{tpu_custom_call.1} parent=1 // pred_check
      _
    $region23: #{tpu_custom_call.1} parent=1 // pred_check_branch
      %27 = sbr.rel (0) target = $region25
    $region24: #{tpu_custom_call.1} parent=1 // pred_region
      _
    $region25: #{tpu_custom_call.1} parent=1 // pred_fallthru
      _
    // Predicated region
    $region26: #{tpu_custom_call.1} parent=1 // pred_check
      _
    $region27: #{tpu_custom_call.1} parent=1 // pred_check_branch
      %29 = sbr.rel (0) target = $region29
    $region28: #{tpu_custom_call.1} parent=1 // pred_region
      _
    $region29: #{tpu_custom_call.1} parent=1 // pred_fallthru
      _
    // Predicated region
    $region30: #{tpu_custom_call.1} parent=1 // pred_check
      _
    $region31: #{tpu_custom_call.1} parent=1 // pred_check_branch
      %31 = sbr.rel (0) target = $region33
    $region32: #{tpu_custom_call.1} parent=1 // pred_region
      _
    $region33: #{tpu_custom_call.1} parent=1 // pred_fallthru
      _
    // Predicated region
    $region34: #{tpu_custom_call.1} parent=1 // pred_check
      _
    $region35: #{tpu_custom_call.1} parent=1 // pred_check_branch
      %33 = sbr.rel (0) target = $region37
    $region36: #{tpu_custom_call.1} parent=1 // pred_region
      _
    $region37: #{tpu_custom_call.1} parent=1 // pred_fallthru
      _
    // Predicated region
    $region38: #{tpu_custom_call.1} parent=1 // pred_check
      _
    $region39: #{tpu_custom_call.1} parent=1 // pred_check_branch
      %35 = sbr.rel (0) target = $region41
    $region40: #{tpu_custom_call.1} parent=1 // pred_region
      _
    $region41: #{tpu_custom_call.1} parent=1 // pred_fallthru
      _
    %v36 = vld [vmem:[%s0] sm:$0xff]
    %37 = vrot.lane.b32.xlu0 %v36, 1
    %v38 = vpop.permute.xlu0 %37
    %v39 = vld [vmem:[%s7] sm:$0x1]
    %v41 = vlaneseq
    %v42 = vshrl.u32 %v41, 7
    %v43 = vsub.s32 0, %v42
    %v44 = vrot.slane %v39, %v43
    %v46 = vmul.f32 %v38, %v44
    %47 = vrot.lane.b32.xlu0 %v36, 127
    %v48 = vpop.permute.xlu0 %47
    %v49 = vld [vmem:[%s8] sm:$0x1]
    %v51 = vlaneseq
    %v52 = vshrl.u32 %v51, 7
    %v53 = vsub.s32 0, %v52
    %v54 = vrot.slane %v49, %v53
    %v56 = vmul.f32 %v48, %v54
    %v57 = vld [vmem:[%s1] sm:$0xff]
    %v58 = vld [vmem:[%s1 + $0x8] sm:$0xff]
    %v59 = vld [vmem:[%s2] sm:$0xff]
    %v60 = vld [vmem:[%s2 + $0x8] sm:$0xff]
    %62 = vset.pattern.permute.xlu0 0
    %63 = vperm.xlu0 %62, %v59
    %v64 = vpop.permute.xlu0 %63
    %67 = vset.pattern.permute.xlu0 0
    %68 = vperm.xlu0 %67, %v60
    %v69 = vpop.permute.xlu0 %68
    %vm71 = vcmask 195584
    %v73 = vsel %vm71, %v57, 0
    %v76 = vsel %vm71, %v58, 0
    %78 = vmatprep.subr.mxu0 0.0
    %79 = vmatpush1.msra.mxu0 0.0
    %80 = vmatprep.subr.mxu0 0.0
    %81 = vmatpush1.msra.mxu0 0.0
    %82 = vmatprep.subr.mxu0 0.0
    %83 = vmatpush1.msra.mxu0 0.0
    %84 = vmatprep.subr.mxu0 0.0
    %85 = vmatpush1.msra.mxu0 0.0
    %86 = vmatprep.subr.mxu0 0.0
    %87 = vmatpush1.msra.mxu0 0.0
    %88 = vmatprep.subr.mxu0 0.0
    %89 = vmatpush1.msra.mxu0 0.0
    %90 = vmatprep.subr.mxu0 0.0
    %91 = vmatpush1.msra.mxu0 0.0
    %92 = vmatprep.subr.mxu0 0.0
    %93 = vmatpush1.msra.mxu0 0.0
    %94 = vmatprep.subr.mxu0 0.0
    %95 = vmatpush1.msra.mxu0 0.0
    %96 = vmatprep.subr.mxu0 0.0
    %97 = vmatpush1.msra.mxu0 0.0
    %98 = vmatprep.subr.mxu0 0.0
    %99 = vmatpush1.msra.mxu0 0.0
    %100 = vmatprep.subr.mxu0 0.0
    %101 = vmatpush1.msra.mxu0 0.0
    %102 = vmatprep.subr.mxu0 0.0
    %103 = vmatpush1.msra.mxu0 0.0
    %104 = vmatprep.subr.mxu0 0.0
    %105 = vmatpush1.msra.mxu0 %v56
    %106 = vmatprep.subr.mxu0 0.0
    %107 = vmatpush1.msra.mxu0 %v36
    %108 = vmatprep.subr.mxu0 0.0
    %109 = vmatpush1.msra.mxu0 %v46
    %110 = vmatprep.subr.mxu0 0.0
    %111 = vmatpush2.msra.mxu0 0.0
    %112 = vmatprep.subr.mxu0 0.0
    %113 = vmatpush2.msra.mxu0 0.0
    %114 = vmatprep.subr.mxu0 0.0
    %115 = vmatpush2.msra.mxu0 0.0
    %116 = vmatprep.subr.mxu0 0.0
    %117 = vmatpush2.msra.mxu0 0.0
    %118 = vmatprep.subr.mxu0 0.0
    %119 = vmatpush2.msra.mxu0 0.0
    %120 = vmatprep.subr.mxu0 0.0
    %121 = vmatpush2.msra.mxu0 0.0
    %122 = vmatprep.subr.mxu0 0.0
    %123 = vmatpush2.msra.mxu0 0.0
    %124 = vmatprep.subr.mxu0 0.0
    %125 = vmatpush2.msra.mxu0 0.0
    %126 = vmatprep.subr.mxu0 0.0
    %127 = vmatpush2.msra.mxu0 0.0
    %128 = vmatprep.subr.mxu0 0.0
    %129 = vmatpush2.msra.mxu0 0.0
    %130 = vmatprep.subr.mxu0 0.0
    %131 = vmatpush2.msra.mxu0 0.0
    %132 = vmatprep.subr.mxu0 0.0
    %133 = vmatpush2.msra.mxu0 0.0
    %134 = vmatprep.subr.mxu0 0.0
    %135 = vmatpush2.msra.mxu0 0.0
    %136 = vmatprep.subr.mxu0 0.0
    %137 = vmatpush2.msra.mxu0 0.0
    %138 = vmatprep.subr.mxu0 0.0
    %139 = vmatpush2.msra.mxu0 0.0
    %140 = vmatprep.subr.mxu0 0.0
    %141 = vmatpush2.msra.mxu0 0.0
    %142 = vmatprep.mubr.f32.mxu0 0.0
    %143 = vmatmul.mubr.f32.gmra.mxu0 %v73
    %v144 = vpop.f32.mrf.mxu0
    %v145 = vadd.f32 %v64, %v144
    %v146 = vpop.f32.mrf.mxu0
    %147 = vmatprep.mubr.f32.mxu0 0.0
    %148 = vmatmul.mubr.f32.gmra.mxu0 %v76
    %v149 = vpop.f32.mrf.mxu0
    %v150 = vadd.f32 %v69, %v149
    %v151 = vpop.f32.mrf.mxu0
    %152 = vdwg.mxu0
    %v153 = vld [vmem:[%s5] sm:$0xff]
    %v154 = vld [vmem:[%s5 + $0x8] sm:$0xff]
    %v155 = vld [vmem:[%s5 + $0x10] sm:$0xff]
    %v156 = vld [vmem:[%s5 + $0x18] sm:$0xff]
    %v157 = vld [vmem:[%s5 + $0x20] sm:$0xff]
    %v158 = vld [vmem:[%s5 + $0x28] sm:$0xff]
    %v159 = vld [vmem:[%s5 + $0x30] sm:$0xff]
    %v160 = vld [vmem:[%s5 + $0x38] sm:$0xff]
    %v161 = vld [vmem:[%s5 + $0x40] sm:$0xff]
    %v162 = vld [vmem:[%s5 + $0x48] sm:$0xff]
    %v163 = vld [vmem:[%s5 + $0x50] sm:$0xff]
    %v164 = vld [vmem:[%s5 + $0x58] sm:$0xff]
    %v165 = vld [vmem:[%s5 + $0x60] sm:$0xff]
    %v166 = vld [vmem:[%s5 + $0x68] sm:$0xff]
    %v167 = vld [vmem:[%s5 + $0x70] sm:$0xff]
    %v168 = vld [vmem:[%s5 + $0x78] sm:$0xff]
    %169 = vmatprep.subr.mxu0 0.0
    %170 = vmatpush1.msra.mxu0 %v168
    %171 = vmatprep.subr.mxu0 0.0
    %172 = vmatpush1.msra.mxu0 %v167
    %173 = vmatprep.subr.mxu0 0.0
    %174 = vmatpush1.msra.mxu0 %v166
    %175 = vmatprep.subr.mxu0 0.0
    %176 = vmatpush1.msra.mxu0 %v165
    %177 = vmatprep.subr.mxu0 0.0
    %178 = vmatpush1.msra.mxu0 %v164
    %179 = vmatprep.subr.mxu0 0.0
    %180 = vmatpush1.msra.mxu0 %v163
    %181 = vmatprep.subr.mxu0 0.0
    %182 = vmatpush1.msra.mxu0 %v162
    %183 = vmatprep.subr.mxu0 0.0
    %184 = vmatpush1.msra.mxu0 %v161
    %185 = vmatprep.subr.mxu0 0.0
    %186 = vmatpush1.msra.mxu0 %v160
    %187 = vmatprep.subr.mxu0 0.0
    %188 = vmatpush1.msra.mxu0 %v159
    %189 = vmatprep.subr.mxu0 0.0
    %190 = vmatpush1.msra.mxu0 %v158
    %191 = vmatprep.subr.mxu0 0.0
    %192 = vmatpush1.msra.mxu0 %v157
    %193 = vmatprep.subr.mxu0 0.0
    %194 = vmatpush1.msra.mxu0 %v156
    %195 = vmatprep.subr.mxu0 0.0
    %196 = vmatpush1.msra.mxu0 %v155
    %197 = vmatprep.subr.mxu0 0.0
    %198 = vmatpush1.msra.mxu0 %v154
    %199 = vmatprep.subr.mxu0 0.0
    %200 = vmatpush1.msra.mxu0 %v153
    %201 = vmatprep.subr.mxu0 0.0
    %202 = vmatpush2.msra.mxu0 0.0
    %203 = vmatprep.subr.mxu0 0.0
    %204 = vmatpush2.msra.mxu0 0.0
    %205 = vmatprep.subr.mxu0 0.0
    %206 = vmatpush2.msra.mxu0 0.0
    %207 = vmatprep.subr.mxu0 0.0
    %208 = vmatpush2.msra.mxu0 0.0
    %209 = vmatprep.subr.mxu0 0.0
    %210 = vmatpush2.msra.mxu0 0.0
    %211 = vmatprep.subr.mxu0 0.0
    %212 = vmatpush2.msra.mxu0 0.0
    %213 = vmatprep.subr.mxu0 0.0
    %214 = vmatpush2.msra.mxu0 0.0
    %215 = vmatprep.subr.mxu0 0.0
    %216 = vmatpush2.msra.mxu0 0.0
    %217 = vmatprep.subr.mxu0 0.0
    %218 = vmatpush2.msra.mxu0 0.0
    %219 = vmatprep.subr.mxu0 0.0
    %220 = vmatpush2.msra.mxu0 0.0
    %221 = vmatprep.subr.mxu0 0.0
    %222 = vmatpush2.msra.mxu0 0.0
    %223 = vmatprep.subr.mxu0 0.0
    %224 = vmatpush2.msra.mxu0 0.0
    %225 = vmatprep.subr.mxu0 0.0
    %226 = vmatpush2.msra.mxu0 0.0
    %227 = vmatprep.subr.mxu0 0.0
    %228 = vmatpush2.msra.mxu0 0.0
    %229 = vmatprep.subr.mxu0 0.0
    %230 = vmatpush2.msra.mxu0 0.0
    %231 = vmatprep.subr.mxu0 0.0
    %232 = vmatpush2.msra.mxu0 0.0
    %233 = vmatprep.mubr.f32.mxu0 0.0
    %234 = vmatmul.mubr.f32.gmra.mxu0 %v145
    %v235 = vpop.f32.mrf.mxu0
    %v236 = vadd.f32 0.0, %v235
    %v237 = vpop.f32.mrf.mxu0
    %238 = vmatprep.mubr.f32.mxu0 0.0
    %239 = vmatmul.mubr.f32.gmra.mxu0 %v150
    %v240 = vpop.f32.mrf.mxu0
    %v241 = vadd.f32 0.0, %v240
    %v242 = vpop.f32.mrf.mxu0
    %243 = vdwg.mxu0
    %v244 = vmul.f32 %v145, %v145
    %v245 = vmul.f32 %v150, %v150
    %246 = vmatprep.subr.mxu0 0.0
    %247 = vmatpush1.msra.mxu0 %v168
    %248 = vmatprep.subr.mxu0 0.0
    %249 = vmatpush1.msra.mxu0 %v167
    %250 = vmatprep.subr.mxu0 0.0
    %251 = vmatpush1.msra.mxu0 %v166
    %252 = vmatprep.subr.mxu0 0.0
    %253 = vmatpush1.msra.mxu0 %v165
    %254 = vmatprep.subr.mxu0 0.0
    %255 = vmatpush1.msra.mxu0 %v164
    %256 = vmatprep.subr.mxu0 0.0
    %257 = vmatpush1.msra.mxu0 %v163
    %258 = vmatprep.subr.mxu0 0.0
    %259 = vmatpush1.msra.mxu0 %v162
    %260 = vmatprep.subr.mxu0 0.0
    %261 = vmatpush1.msra.mxu0 %v161
    %262 = vmatprep.subr.mxu0 0.0
    %263 = vmatpush1.msra.mxu0 %v160
    %264 = vmatprep.subr.mxu0 0.0
    %265 = vmatpush1.msra.mxu0 %v159
    %266 = vmatprep.subr.mxu0 0.0
    %267 = vmatpush1.msra.mxu0 %v158
    %268 = vmatprep.subr.mxu0 0.0
    %269 = vmatpush1.msra.mxu0 %v157
    %270 = vmatprep.subr.mxu0 0.0
    %271 = vmatpush1.msra.mxu0 %v156
    %272 = vmatprep.subr.mxu0 0.0
    %273 = vmatpush1.msra.mxu0 %v155
    %274 = vmatprep.subr.mxu0 0.0
    %275 = vmatpush1.msra.mxu0 %v154
    %276 = vmatprep.subr.mxu0 0.0
    %277 = vmatpush1.msra.mxu0 %v153
    %278 = vmatprep.subr.mxu0 0.0
    %279 = vmatpush2.msra.mxu0 0.0
    %280 = vmatprep.subr.mxu0 0.0
    %281 = vmatpush2.msra.mxu0 0.0
    %282 = vmatprep.subr.mxu0 0.0
    %283 = vmatpush2.msra.mxu0 0.0
    %284 = vmatprep.subr.mxu0 0.0
    %285 = vmatpush2.msra.mxu0 0.0
    %286 = vmatprep.subr.mxu0 0.0
    %287 = vmatpush2.msra.mxu0 0.0
    %288 = vmatprep.subr.mxu0 0.0
    %289 = vmatpush2.msra.mxu0 0.0
    %290 = vmatprep.subr.mxu0 0.0
    %291 = vmatpush2.msra.mxu0 0.0
    %292 = vmatprep.subr.mxu0 0.0
    %293 = vmatpush2.msra.mxu0 0.0
    %294 = vmatprep.subr.mxu0 0.0
    %295 = vmatpush2.msra.mxu0 0.0
    %296 = vmatprep.subr.mxu0 0.0
    %297 = vmatpush2.msra.mxu0 0.0
    %298 = vmatprep.subr.mxu0 0.0
    %299 = vmatpush2.msra.mxu0 0.0
    %300 = vmatprep.subr.mxu0 0.0
    %301 = vmatpush2.msra.mxu0 0.0
    %302 = vmatprep.subr.mxu0 0.0
    %303 = vmatpush2.msra.mxu0 0.0
    %304 = vmatprep.subr.mxu0 0.0
    %305 = vmatpush2.msra.mxu0 0.0
    %306 = vmatprep.subr.mxu0 0.0
    %307 = vmatpush2.msra.mxu0 0.0
    %308 = vmatprep.subr.mxu0 0.0
    %309 = vmatpush2.msra.mxu0 0.0
    %310 = vmatprep.mubr.f32.mxu0 0.0
    %311 = vmatmul.mubr.f32.gmra.mxu0 %v244
    %v312 = vpop.f32.mrf.mxu0
    %v313 = vadd.f32 0.0, %v312
    %v314 = vpop.f32.mrf.mxu0
    %315 = vmatprep.mubr.f32.mxu0 0.0
    %316 = vmatmul.mubr.f32.gmra.mxu0 %v245
    %v317 = vpop.f32.mrf.mxu0
    %v318 = vadd.f32 0.0, %v317
    %v319 = vpop.f32.mrf.mxu0
    %320 = vdwg.mxu0
    %v321 = vld [vmem:[%s9] sm:$0xff]
    %v322 = vld [vmem:[%s9 + $0x8] sm:$0xff]
    %vm323 = vcmask 130048
    %v325 = vsel %vm323, %v321, 0
    %v328 = vsel %vm323, %v322, 0
    %330 = vmatprep.subr.mxu0 0.0
    %331 = vmatpush1.msra.mxu0 0.0
    %332 = vmatprep.subr.mxu0 0.0
    %333 = vmatpush1.msra.mxu0 0.0
    %334 = vmatprep.subr.mxu0 0.0
    %335 = vmatpush1.msra.mxu0 0.0
    %336 = vmatprep.subr.mxu0 0.0
    %337 = vmatpush1.msra.mxu0 0.0
    %338 = vmatprep.subr.mxu0 0.0
    %339 = vmatpush1.msra.mxu0 0.0
    %340 = vmatprep.subr.mxu0 0.0
    %341 = vmatpush1.msra.mxu0 0.0
    %342 = vmatprep.subr.mxu0 0.0
    %343 = vmatpush1.msra.mxu0 0.0
    %344 = vmatprep.subr.mxu0 0.0
    %345 = vmatpush1.msra.mxu0 0.0
    %346 = vmatprep.subr.mxu0 0.0
    %347 = vmatpush1.msra.mxu0 0.0
    %348 = vmatprep.subr.mxu0 0.0
    %349 = vmatpush1.msra.mxu0 0.0
    %350 = vmatprep.subr.mxu0 0.0
    %351 = vmatpush1.msra.mxu0 0.0
    %352 = vmatprep.subr.mxu0 0.0
    %353 = vmatpush1.msra.mxu0 0.0
    %354 = vmatprep.subr.mxu0 0.0
    %355 = vmatpush1.msra.mxu0 0.0
    %356 = vmatprep.subr.mxu0 0.0
    %357 = vmatpush1.msra.mxu0 0.0
    %358 = vmatprep.subr.mxu0 0.0
    %359 = vmatpush1.msra.mxu0 %v241
    %360 = vmatprep.subr.mxu0 0.0
    %361 = vmatpush1.msra.mxu0 %v236
    %362 = vmatprep.subr.mxu0 0.0
    %363 = vmatpush2.msra.mxu0 0.0
    %364 = vmatprep.subr.mxu0 0.0
    %365 = vmatpush2.msra.mxu0 0.0
    %366 = vmatprep.subr.mxu0 0.0
    %367 = vmatpush2.msra.mxu0 0.0
    %368 = vmatprep.subr.mxu0 0.0
    %369 = vmatpush2.msra.mxu0 0.0
    %370 = vmatprep.subr.mxu0 0.0
    %371 = vmatpush2.msra.mxu0 0.0
    %372 = vmatprep.subr.mxu0 0.0
    %373 = vmatpush2.msra.mxu0 0.0
    %374 = vmatprep.subr.mxu0 0.0
    %375 = vmatpush2.msra.mxu0 0.0
    %376 = vmatprep.subr.mxu0 0.0
    %377 = vmatpush2.msra.mxu0 0.0
    %378 = vmatprep.subr.mxu0 0.0
    %379 = vmatpush2.msra.mxu0 0.0
    %380 = vmatprep.subr.mxu0 0.0
    %381 = vmatpush2.msra.mxu0 0.0
    %382 = vmatprep.subr.mxu0 0.0
    %383 = vmatpush2.msra.mxu0 0.0
    %384 = vmatprep.subr.mxu0 0.0
    %385 = vmatpush2.msra.mxu0 0.0
    %386 = vmatprep.subr.mxu0 0.0
    %387 = vmatpush2.msra.mxu0 0.0
    %388 = vmatprep.subr.mxu0 0.0
    %389 = vmatpush2.msra.mxu0 0.0
    %390 = vmatprep.subr.mxu0 0.0
    %391 = vmatpush2.msra.mxu0 0.0
    %392 = vmatprep.subr.mxu0 0.0
    %393 = vmatpush2.msra.mxu0 0.0
    %394 = vmatprep.mubr.f32.mxu0 0.0
    %395 = vmatmul.mubr.f32.gmra.mxu0 %v325
    %v396 = vpop.f32.mrf.mxu0
    %v397 = vadd.f32 0.0, %v396
    %v398 = vpop.f32.mrf.mxu0
    %399 = vmatprep.mubr.f32.mxu0 0.0
    %400 = vmatmul.mubr.f32.gmra.mxu0 %v328
    %v401 = vpop.f32.mrf.mxu0
    %v402 = vadd.f32 0.0, %v401
    %v403 = vpop.f32.mrf.mxu0
    %404 = vdwg.mxu0
    %405 = vmatprep.subr.mxu0 0.0
    %406 = vmatpush1.msra.mxu0 0.0
    %407 = vmatprep.subr.mxu0 0.0
    %408 = vmatpush1.msra.mxu0 0.0
    %409 = vmatprep.subr.mxu0 0.0
    %410 = vmatpush1.msra.mxu0 0.0
    %411 = vmatprep.subr.mxu0 0.0
    %412 = vmatpush1.msra.mxu0 0.0
    %413 = vmatprep.subr.mxu0 0.0
    %414 = vmatpush1.msra.mxu0 0.0
    %415 = vmatprep.subr.mxu0 0.0
    %416 = vmatpush1.msra.mxu0 0.0
    %417 = vmatprep.subr.mxu0 0.0
    %418 = vmatpush1.msra.mxu0 0.0
    %419 = vmatprep.subr.mxu0 0.0
    %420 = vmatpush1.msra.mxu0 0.0
    %421 = vmatprep.subr.mxu0 0.0
    %422 = vmatpush1.msra.mxu0 0.0
    %423 = vmatprep.subr.mxu0 0.0
    %424 = vmatpush1.msra.mxu0 0.0
    %425 = vmatprep.subr.mxu0 0.0
    %426 = vmatpush1.msra.mxu0 0.0
    %427 = vmatprep.subr.mxu0 0.0
    %428 = vmatpush1.msra.mxu0 0.0
    %429 = vmatprep.subr.mxu0 0.0
    %430 = vmatpush1.msra.mxu0 0.0
    %431 = vmatprep.subr.mxu0 0.0
    %432 = vmatpush1.msra.mxu0 0.0
    %433 = vmatprep.subr.mxu0 0.0
    %434 = vmatpush1.msra.mxu0 %v318
    %435 = vmatprep.subr.mxu0 0.0
    %436 = vmatpush1.msra.mxu0 %v313
    %437 = vmatprep.subr.mxu0 0.0
    %438 = vmatpush2.msra.mxu0 0.0
    %439 = vmatprep.subr.mxu0 0.0
    %440 = vmatpush2.msra.mxu0 0.0
    %441 = vmatprep.subr.mxu0 0.0
    %442 = vmatpush2.msra.mxu0 0.0
    %443 = vmatprep.subr.mxu0 0.0
    %444 = vmatpush2.msra.mxu0 0.0
    %445 = vmatprep.subr.mxu0 0.0
    %446 = vmatpush2.msra.mxu0 0.0
    %447 = vmatprep.subr.mxu0 0.0
    %448 = vmatpush2.msra.mxu0 0.0
    %449 = vmatprep.subr.mxu0 0.0
    %450 = vmatpush2.msra.mxu0 0.0
    %451 = vmatprep.subr.mxu0 0.0
    %452 = vmatpush2.msra.mxu0 0.0
    %453 = vmatprep.subr.mxu0 0.0
    %454 = vmatpush2.msra.mxu0 0.0
    %455 = vmatprep.subr.mxu0 0.0
    %456 = vmatpush2.msra.mxu0 0.0
    %457 = vmatprep.subr.mxu0 0.0
    %458 = vmatpush2.msra.mxu0 0.0
    %459 = vmatprep.subr.mxu0 0.0
    %460 = vmatpush2.msra.mxu0 0.0
    %461 = vmatprep.subr.mxu0 0.0
    %462 = vmatpush2.msra.mxu0 0.0
    %463 = vmatprep.subr.mxu0 0.0
    %464 = vmatpush2.msra.mxu0 0.0
    %465 = vmatprep.subr.mxu0 0.0
    %466 = vmatpush2.msra.mxu0 0.0
    %467 = vmatprep.subr.mxu0 0.0
    %468 = vmatpush2.msra.mxu0 0.0
    %469 = vmatprep.mubr.f32.mxu0 0.0
    %470 = vmatmul.mubr.f32.gmra.mxu0 %v325
    %v471 = vpop.f32.mrf.mxu0
    %v472 = vadd.f32 0.0, %v471
    %v473 = vpop.f32.mrf.mxu0
    %474 = vmatprep.mubr.f32.mxu0 0.0
    %475 = vmatmul.mubr.f32.gmra.mxu0 %v328
    %v476 = vpop.f32.mrf.mxu0
    %v477 = vadd.f32 0.0, %v476
    %v478 = vpop.f32.mrf.mxu0
    %479 = vdwg.mxu0
    %v480 = vmul.f32 %v397, %v397
    %v481 = vmul.f32 %v402, %v402
    %v482 = vsub.f32 %v472, %v480
    %v483 = vsub.f32 %v477, %v481
    %v484 = vmax.f32 %v482, 0.0
    %v485 = vmax.f32 %v483, 0.0
    %v486 = vadd.f32 %v484, 1e-05
    %v487 = vadd.f32 %v485, 1e-05
    %v488 = vrsqrt.pop %v486
    %v489 = vrsqrt.pop %v487
    %v490 = vld [vmem:[%s3] sm:$0xff]
    %v491 = vld [vmem:[%s3 + $0x8] sm:$0xff]
    %v492 = vmul.f32 %v488, %v490
    %v493 = vmul.f32 %v489, %v491
    %v494 = vld [vmem:[%s4] sm:$0xff]
    %v495 = vld [vmem:[%s4 + $0x8] sm:$0xff]
    %v496 = vmul.f32 %v397, %v492
    %v497 = vmul.f32 %v402, %v493
    %v498 = vsub.f32 %v494, %v496
    %v499 = vsub.f32 %v495, %v497
    %v500 = vld [vmem:[%s6] sm:$0x3]
    %vm501 = vcmask 15360
    %v503 = vsel %vm501, %v492, 0
    %v506 = vsel %vm501, %v493, 0
    %vm508 = vcmask 1041408
    %v510 = vsel %vm508, %v500, 0
    %512 = vmatprep.subr.mxu0 0.0
    %513 = vmatpush1.msra.mxu0 0.0
    %514 = vmatprep.subr.mxu0 0.0
    %515 = vmatpush1.msra.mxu0 0.0
    %516 = vmatprep.subr.mxu0 0.0
    %517 = vmatpush1.msra.mxu0 0.0
    %518 = vmatprep.subr.mxu0 0.0
    %519 = vmatpush1.msra.mxu0 0.0
    %520 = vmatprep.subr.mxu0 0.0
    %521 = vmatpush1.msra.mxu0 0.0
    %522 = vmatprep.subr.mxu0 0.0
    %523 = vmatpush1.msra.mxu0 0.0
    %524 = vmatprep.subr.mxu0 0.0
    %525 = vmatpush1.msra.mxu0 0.0
    %526 = vmatprep.subr.mxu0 0.0
    %527 = vmatpush1.msra.mxu0 0.0
    %528 = vmatprep.subr.mxu0 0.0
    %529 = vmatpush1.msra.mxu0 0.0
    %530 = vmatprep.subr.mxu0 0.0
    %531 = vmatpush1.msra.mxu0 0.0
    %532 = vmatprep.subr.mxu0 0.0
    %533 = vmatpush1.msra.mxu0 0.0
    %534 = vmatprep.subr.mxu0 0.0
    %535 = vmatpush1.msra.mxu0 0.0
    %536 = vmatprep.subr.mxu0 0.0
    %537 = vmatpush1.msra.mxu0 0.0
    %538 = vmatprep.subr.mxu0 0.0
    %539 = vmatpush1.msra.mxu0 0.0
    %540 = vmatprep.subr.mxu0 0.0
    %541 = vmatpush1.msra.mxu0 0.0
    %542 = vmatprep.subr.mxu0 0.0
    %543 = vmatpush1.msra.mxu0 %v510
    %544 = vmatprep.subr.mxu0 0.0
    %545 = vmatpush2.msra.mxu0 0.0
    %546 = vmatprep.subr.mxu0 0.0
    %547 = vmatpush2.msra.mxu0 0.0
    %548 = vmatprep.subr.mxu0 0.0
    %549 = vmatpush2.msra.mxu0 0.0
    %550 = vmatprep.subr.mxu0 0.0
    %551 = vmatpush2.msra.mxu0 0.0
    %552 = vmatprep.subr.mxu0 0.0
    %553 = vmatpush2.msra.mxu0 0.0
    %554 = vmatprep.subr.mxu0 0.0
    %555 = vmatpush2.msra.mxu0 0.0
    %556 = vmatprep.subr.mxu0 0.0
    %557 = vmatpush2.msra.mxu0 0.0
    %558 = vmatprep.subr.mxu0 0.0
    %559 = vmatpush2.msra.mxu0 0.0
    %560 = vmatprep.subr.mxu0 0.0
    %561 = vmatpush2.msra.mxu0 0.0
    %562 = vmatprep.subr.mxu0 0.0
    %563 = vmatpush2.msra.mxu0 0.0
    %564 = vmatprep.subr.mxu0 0.0
    %565 = vmatpush2.msra.mxu0 0.0
    %566 = vmatprep.subr.mxu0 0.0
    %567 = vmatpush2.msra.mxu0 0.0
    %568 = vmatprep.subr.mxu0 0.0
    %569 = vmatpush2.msra.mxu0 0.0
    %570 = vmatprep.subr.mxu0 0.0
    %571 = vmatpush2.msra.mxu0 0.0
    %572 = vmatprep.subr.mxu0 0.0
    %573 = vmatpush2.msra.mxu0 0.0
    %574 = vmatprep.subr.mxu0 0.0
    %575 = vmatpush2.msra.mxu0 0.0
    %576 = vmatprep.mubr.f32.mxu0 0.0
    %577 = vmatmul.mubr.f32.gmra.mxu0 %v503
    %v578 = vpop.f32.mrf.mxu0
    %v579 = vadd.f32 0.0, %v578
    %v580 = vpop.f32.mrf.mxu0
    %581 = vmatprep.mubr.f32.mxu0 0.0
    %582 = vmatmul.mubr.f32.gmra.mxu0 %v506
    %v583 = vpop.f32.mrf.mxu0
    %v584 = vadd.f32 0.0, %v583
    %v585 = vpop.f32.mrf.mxu0
    %586 = vdwg.mxu0
    %v588 = vsel %vm501, %v498, 0
    %v591 = vsel %vm501, %v499, 0
    %593 = vmatprep.subr.mxu0 0.0
    %594 = vmatpush1.msra.mxu0 0.0
    %595 = vmatprep.subr.mxu0 0.0
    %596 = vmatpush1.msra.mxu0 0.0
    %597 = vmatprep.subr.mxu0 0.0
    %598 = vmatpush1.msra.mxu0 0.0
    %599 = vmatprep.subr.mxu0 0.0
    %600 = vmatpush1.msra.mxu0 0.0
    %601 = vmatprep.subr.mxu0 0.0
    %602 = vmatpush1.msra.mxu0 0.0
    %603 = vmatprep.subr.mxu0 0.0
    %604 = vmatpush1.msra.mxu0 0.0
    %605 = vmatprep.subr.mxu0 0.0
    %606 = vmatpush1.msra.mxu0 0.0
    %607 = vmatprep.subr.mxu0 0.0
    %608 = vmatpush1.msra.mxu0 0.0
    %609 = vmatprep.subr.mxu0 0.0
    %610 = vmatpush1.msra.mxu0 0.0
    %611 = vmatprep.subr.mxu0 0.0
    %612 = vmatpush1.msra.mxu0 0.0
    %613 = vmatprep.subr.mxu0 0.0
    %614 = vmatpush1.msra.mxu0 0.0
    %615 = vmatprep.subr.mxu0 0.0
    %616 = vmatpush1.msra.mxu0 0.0
    %617 = vmatprep.subr.mxu0 0.0
    %618 = vmatpush1.msra.mxu0 0.0
    %619 = vmatprep.subr.mxu0 0.0
    %620 = vmatpush1.msra.mxu0 0.0
    %621 = vmatprep.subr.mxu0 0.0
    %622 = vmatpush1.msra.mxu0 0.0
    %623 = vmatprep.subr.mxu0 0.0
    %624 = vmatpush1.msra.mxu0 %v510
    %625 = vmatprep.subr.mxu0 0.0
    %626 = vmatpush2.msra.mxu0 0.0
    %627 = vmatprep.subr.mxu0 0.0
    %628 = vmatpush2.msra.mxu0 0.0
    %629 = vmatprep.subr.mxu0 0.0
    %630 = vmatpush2.msra.mxu0 0.0
    %631 = vmatprep.subr.mxu0 0.0
    %632 = vmatpush2.msra.mxu0 0.0
    %633 = vmatprep.subr.mxu0 0.0
    %634 = vmatpush2.msra.mxu0 0.0
    %635 = vmatprep.subr.mxu0 0.0
    %636 = vmatpush2.msra.mxu0 0.0
    %637 = vmatprep.subr.mxu0 0.0
    %638 = vmatpush2.msra.mxu0 0.0
    %639 = vmatprep.subr.mxu0 0.0
    %640 = vmatpush2.msra.mxu0 0.0
    %641 = vmatprep.subr.mxu0 0.0
    %642 = vmatpush2.msra.mxu0 0.0
    %643 = vmatprep.subr.mxu0 0.0
    %644 = vmatpush2.msra.mxu0 0.0
    %645 = vmatprep.subr.mxu0 0.0
    %646 = vmatpush2.msra.mxu0 0.0
    %647 = vmatprep.subr.mxu0 0.0
    %648 = vmatpush2.msra.mxu0 0.0
    %649 = vmatprep.subr.mxu0 0.0
    %650 = vmatpush2.msra.mxu0 0.0
    %651 = vmatprep.subr.mxu0 0.0
    %652 = vmatpush2.msra.mxu0 0.0
    %653 = vmatprep.subr.mxu0 0.0
    %654 = vmatpush2.msra.mxu0 0.0
    %655 = vmatprep.subr.mxu0 0.0
    %656 = vmatpush2.msra.mxu0 0.0
    %657 = vmatprep.mubr.f32.mxu0 0.0
    %658 = vmatmul.mubr.f32.gmra.mxu0 %v588
    %v659 = vpop.f32.mrf.mxu0
    %v660 = vadd.f32 0.0, %v659
    %v661 = vpop.f32.mrf.mxu0
    %662 = vmatprep.mubr.f32.mxu0 0.0
    %663 = vmatmul.mubr.f32.gmra.mxu0 %v591
    %v664 = vpop.f32.mrf.mxu0
    %v665 = vadd.f32 0.0, %v664
    %v666 = vpop.f32.mrf.mxu0
    %667 = vdwg.mxu0
    %v668 = vmul.f32 %v145, %v579
    %v669 = vmul.f32 %v150, %v584
    %v670 = vadd.f32 %v668, %v660
    %v671 = vadd.f32 %v669, %v665
    %v672 = vxor.u32 %v670, 2147483648
    %v673 = vxor.u32 %v671, 2147483648
    %v674 = vmul.f32 %v672, 1.442695
    %v675 = vpow.pop %v674
    %v676 = vmul.f32 %v673, 1.442695
    %v677 = vpow.pop %v676
    %v678 = vadd.f32 %v675, 1.0
    %v679 = vadd.f32 %v677, 1.0
    %v680 = vrcp.pop %v678
    %v681 = vmul.f32 1.0, %v680
    %v682 = vrcp.pop %v679
    %v683 = vmul.f32 1.0, %v682
    %v684 = vmul.f32 %v670, %v681
    %v685 = vmul.f32 %v671, %v683
    %686 = vst [vmem:[#allocation2] sm:$0xff] %v684
    %687 = vst [vmem:[#allocation2 + $0x8] sm:$0xff] %v685
    // Predicated region
    $region42: #{tpu_custom_call.1} parent=1 // pred_check
      _
    $region43: #{tpu_custom_call.1} parent=1 // pred_check_branch
      %689 = sbr.rel (0) target = $region45
    $region44: #{tpu_custom_call.1} parent=1 // pred_region
      %s691 = ssub.s32 256, 256
      %692 = vsyncadd [#allocation3], %s691
      %s693 = sshll.u32 [#allocation2], 4
      %s694 = int_to_ptr.vmem [resolvable:$true] %s693
      %699 = dma.vmem_to_hbm [thread:$0]  %s694, 256, %s10, [#allocation3], 128, 128, 8
    $region45: #{tpu_custom_call.1} parent=1 // pred_fallthru
      _
    // Predicated region
    $region46: #{tpu_custom_call.1} parent=1 // pred_check
      _
    $region47: #{tpu_custom_call.1} parent=1 // pred_check_branch
      %701 = sbr.rel (0) target = $region49
    $region48: #{tpu_custom_call.1} parent=1 // pred_region
      %702 = dma.done [#allocation3], 256
    $region49: #{tpu_custom_call.1} parent=1 // pred_fallthru
      _
    %703 = vsyncpa [#allocation3], 1

</llo_original>
